<compile_context>
chip_gen: v7x
topology: tpu7x:2x2x1
jax: 0.10.0
libtpu: 0.0.40
codegen_flags: <defaults>
</compile_context>

<pallas_src>
import jax
import jax.numpy as jnp
from jax.experimental import pallas as pl
from jax.experimental.pallas import tpu as pltpu


def _round_up(x, m):
    return pl.cdiv(x, m) * m


def _lora_linear_kernel(x_ref, wt_ref, b_ref, xb_ref, lat_ref, o_ref, acc_ref):
    # x_ref:   (tm, tk)    bf16 row/K tile of the flattened input
    # wt_ref:  (tk, tn)    bf16 frozen weight, pre-transposed, K/N tile
    # b_ref:   (1, tn)     f32 frozen bias, N tile
    # xb_ref:  (tm, 128)   bf16 hoisted LoRA intermediate (x @ lora_b.T), rank-padded
    # lat_ref: (128, tn)   bf16 (scaling * lora_a).T, rank-padded, N tile
    # o_ref:   (tm, tn)    output tile
    # acc_ref: (tm, tn)    f32 accumulator scratch (carried across the K axis)
    k = pl.program_id(2)

    @pl.when(k == 0)
    def _():
        acc_ref[...] = jnp.zeros_like(acc_ref)

    # Frozen path partial sum on the MXU: bf16 operands, f32 accumulate.
    acc_ref[...] += jnp.dot(x_ref[...], wt_ref[...],
                            preferred_element_type=jnp.float32)

    @pl.when(k == pl.num_programs(2) - 1)
    def _():
        acc = acc_ref[...] + b_ref[...].astype(jnp.float32)
        # LoRA path: single rank-128-padded MXU matmul per output tile.
        acc = acc + jnp.dot(xb_ref[...], lat_ref[...],
                            preferred_element_type=jnp.float32)
        o_ref[...] = acc.astype(o_ref.dtype)


def lora_linear(x, w, bias, lora_a, lora_b, *, alpha, r):
    """x: (..., in_features) -> (..., out_features)."""
    scaling = float(alpha) / float(r)
    in_features = x.shape[-1]
    out_features = w.shape[0]
    out_dtype = x.dtype
    cdt = jnp.bfloat16  # MXU-native compute dtype; accumulation stays f32.

    lead_shape = x.shape[:-1]
    x2 = x.reshape(-1, in_features)
    m = x2.shape[0]

    # ------------------------- tile / padding choices -------------------------
    # Row (M) tile: big for MXU utilisation, clamped for tiny inputs.
    if m >= 1024:
        tm = 512
    elif m >= 256:
        tm = 256
    else:
        tm = int(_round_up(m, 16))
    tm = int(min(tm, _round_up(m, 16)))
    m_pad = int(_round_up(m, tm))

    # Output (N / lane) tile: lane-dense and MXU-aligned. Pad out_features UP
    # to a multiple of the chosen tn (never degrade tn to 128).
    if out_features <= 512:
        tn = int(_round_up(out_features, 128))
        n_pad = tn
    else:
        tn = 512
        if int(_round_up(out_features, 512)) - out_features > out_features // 8:
            tn = 256  # avoid >12.5% wasted columns for awkward widths
        n_pad = int(_round_up(out_features, tn))

    # Contraction (K) tile: full-K residency for moderate widths, else K-tile
    # with an f32 accumulator so tm x tn stays large at fixed VMEM (v7x 64 MiB).
    if in_features <= 2048:
        tk = in_features
        in_pad = in_features
    else:
        tk = 1024
        in_pad = int(_round_up(in_features, tk))

    r_pad = int(_round_up(r, 128))  # one full lane tile for the LoRA rank

    # -------------------- one-time wrapper-side operand prep -------------------
    x2 = x2.astype(cdt)
    if m_pad != m:
        x2 = jnp.pad(x2, ((0, m_pad - m), (0, 0)))

    # Hoisted first LoRA matmul: xb = x @ lora_b.T  (m*in*r flops, negligible).
    lb_t = lora_b.T.astype(cdt)                                   # (in, r)
    xb = jnp.dot(x2, lb_t, preferred_element_type=jnp.float32)    # (m_pad, r) f32
    xb = jnp.pad(xb, ((0, 0), (0, r_pad - r))).astype(cdt)        # (m_pad, 128)

    la_t = (lora_a.astype(jnp.float32) * scaling).T.astype(cdt)   # (r, out), scaling folded
    la_t = jnp.pad(la_t, ((0, r_pad - r), (0, n_pad - out_features)))

    w_t = w.T.astype(cdt)                                         # (in, out)
    w_t = jnp.pad(w_t, ((0, in_pad - in_features), (0, n_pad - out_features)))
    if in_pad != in_features:
        x2 = jnp.pad(x2, ((0, 0), (0, in_pad - in_features)))

    bias2 = bias.reshape(1, out_features).astype(jnp.float32)
    bias2 = jnp.pad(bias2, ((0, 0), (0, n_pad - out_features)))

    # ------------------------------ grid layout -------------------------------
    m_tiles = m_pad // tm
    n_tiles = n_pad // tn
    k_tiles = in_pad // tk

    # When full K is resident, pick the grid order that minimizes HBM streaming:
    #   i-outer:  W re-streamed per row tile  -> m_tiles*in*n + m*in bytes
    #   j-outer:  x re-streamed per col tile  -> in*n + n_tiles*m*in bytes
    traffic_i_outer = m_tiles * in_pad * n_pad + m_pad * in_pad
    traffic_j_outer = in_pad * n_pad + n_tiles * m_pad * in_pad
    swap_ij = (k_tiles == 1 and m_tiles > 1 and n_tiles > 1 and
               traffic_j_outer < traffic_i_outer)

    if swap_ij:
        grid = (n_tiles, m_tiles, k_tiles)
        x_map = lambda a, b, k: (b, k)
        w_map = lambda a, b, k: (k, a)
        b_map = lambda a, b, k: (0, a)
        xb_map = lambda a, b, k: (b, 0)
        la_map = lambda a, b, k: (0, a)
        o_map = lambda a, b, k: (b, a)
    else:
        grid = (m_tiles, n_tiles, k_tiles)
        x_map = lambda a, b, k: (a, k)
        w_map = lambda a, b, k: (k, b)
        b_map = lambda a, b, k: (0, b)
        xb_map = lambda a, b, k: (a, 0)
        la_map = lambda a, b, k: (0, b)
        o_map = lambda a, b, k: (a, b)

    # ---------------------- VMEM budget + cost estimate -----------------------
    out_bytes = jnp.dtype(out_dtype).itemsize
    tile_bytes = (tm * tk * 2 + tk * tn * 2 + tn * 4 + tm * r_pad * 2 +
                  r_pad * tn * 2 + tm * tn * out_bytes)
    # Double-buffered input/output tiles + f32 accumulator; capped well below
    # v7x's 64 MiB per-TensorCore VMEM.
    vmem_limit = int(min(48 * 1024 * 1024,
                         max(2 * tile_bytes + tm * tn * 4, 32 * 1024 * 1024)))

    flops = 2 * m_pad * in_pad * n_pad + 2 * m_pad * r_pad * n_pad
    if swap_ij:
        w_stream = in_pad * n_pad * 2
        x_stream = n_tiles * m_pad * in_pad * 2
    else:
        w_stream = m_tiles * in_pad * n_pad * 2
        x_stream = (m_pad * in_pad * 2 if k_tiles == 1
                    else n_tiles * m_pad * in_pad * 2)
    bytes_accessed = (w_stream + x_stream + m_pad * n_pad * out_bytes +
                      m_pad * r_pad * 2 + n_tiles * r_pad * n_pad * 2 + n_pad * 4)

    out = pl.pallas_call(
        _lora_linear_kernel,
        out_shape=jax.ShapeDtypeStruct((m_pad, n_pad), out_dtype),
        grid_spec=pltpu.PrefetchScalarGridSpec(
            num_scalar_prefetch=0,
            grid=grid,
            in_specs=[
                pl.BlockSpec((tm, tk), x_map),        # x (bf16)
                pl.BlockSpec((tk, tn), w_map),        # W_t (bf16)
                pl.BlockSpec((1, tn), b_map),         # bias (f32)
                pl.BlockSpec((tm, r_pad), xb_map),    # x @ lora_b.T (bf16)
                pl.BlockSpec((r_pad, tn), la_map),    # (scaling*lora_a).T (bf16)
            ],
            out_specs=pl.BlockSpec((tm, tn), o_map),
            scratch_shapes=[pltpu.VMEM((tm, tn), jnp.float32)],
        ),
        compiler_params=pltpu.CompilerParams(
            dimension_semantics=("parallel", "parallel", "arbitrary"),
            vmem_limit_bytes=vmem_limit,
        ),
        cost_estimate=pl.CostEstimate(
            flops=int(flops), transcendentals=0,
            bytes_accessed=int(bytes_accessed)),
    )(x2, w_t, bias2, xb, la_t)

    out = out[:m, :out_features]
    return out.reshape(*lead_shape, out_features)


def lora_linear_ref(x, w, bias, lora_a, lora_b, *, alpha, r):
    scaling = alpha / r
    base = x @ w.T + bias
    lora = (x @ lora_b.T) @ lora_a.T * scaling
    return base + lora


if __name__ == "__main__":
    # Small shapes consistent with the module's 3-D path: (batch, seq, in_features)
    batch, seq, in_features, out_features = 2, 8, 32, 64
    r, alpha = 4, 8

    key = jax.random.PRNGKey(0)
    kx, kw, kb, ka, klb = jax.random.split(key, 5)

    x = jax.random.normal(kx, (batch, seq, in_features), dtype=jnp.float32)

    # Deterministic synthetic parameters (module __init__ gives the shapes).
    # original_layer = nn.Linear(in_features, out_features)
    w = jax.random.normal(kw, (out_features, in_features), dtype=jnp.float32) * 0.05
    bias = jax.random.normal(kb, (out_features,), dtype=jnp.float32) * 0.05
    # lora_a: kaiming-uniform-like; lora_b: nonzero random (module zeros it,
    # random here so the LoRA path is actually exercised numerically).
    bound_a = 1.0 / jnp.sqrt(r)
    lora_a = jax.random.uniform(ka, (out_features, r), dtype=jnp.float32,
                                minval=-bound_a, maxval=bound_a)
    lora_b = jax.random.normal(klb, (r, in_features), dtype=jnp.float32) * 0.05

    y = lora_linear(x, w, bias, lora_a, lora_b, alpha=alpha, r=r)
    y = jax.block_until_ready(y)

    y_ref = lora_linear_ref(x, w, bias, lora_a, lora_b, alpha=alpha, r=r)
    assert y.shape == (batch, seq, out_features)
    # bf16 MXU operands with f32 accumulation -> bf16-level tolerance.
    assert jnp.allclose(y, y_ref, atol=2e-2, rtol=2e-2), "mismatch vs reference"

    print("KERNEL_OK")
</pallas_src>

<mosaic_0001>
module attributes {stable_mosaic.version = 11 : i64} {
  func.func @_lora_linear_kernel(%arg0: i32, %arg1: i32, %arg2: i32, %arg3: memref<16x32xbf16, #tpu.memory_space<vmem>>, %arg4: memref<32x128xbf16, #tpu.memory_space<vmem>>, %arg5: memref<1x128xf32, #tpu.memory_space<vmem>>, %arg6: memref<16x128xbf16, #tpu.memory_space<vmem>>, %arg7: memref<128x128xbf16, #tpu.memory_space<vmem>>, %arg8: memref<16x128xf32, #tpu.memory_space<vmem>>, %arg9: memref<16x128xf32, #tpu.memory_space<vmem>>) attributes {dimension_semantics = [#tpu.dimension_semantics<parallel>, #tpu.dimension_semantics<parallel>, #tpu.dimension_semantics<arbitrary>], iteration_bounds = array<i64: 1, 1, 1>, scalar_prefetch = 0 : i64, scratch_operands = 1 : i64, tpu.core_type = #tpu.core_type<tc>, window_params = [{transform_indices = @transform_0, window_bounds = array<i64: 16, 32>}, {transform_indices = @transform_1, window_bounds = array<i64: 32, 128>}, {transform_indices = @transform_2, window_bounds = array<i64: 1, 128>}, {transform_indices = @transform_3, window_bounds = array<i64: 16, 128>}, {transform_indices = @transform_4, window_bounds = array<i64: 128, 128>}, {transform_indices = @transform_5, window_bounds = array<i64: 16, 128>}]} {
    %c0_i32 = arith.constant 0 : i32
    %0 = arith.cmpi eq, %arg2, %c0_i32 : i32
    %1 = arith.extui %0 : i1 to i32
    %c0_i32_0 = arith.constant 0 : i32
    %2 = arith.cmpi ne, %1, %c0_i32_0 : i32
    scf.if %2 {
      %cst_10 = arith.constant 0.000000e+00 : f32
      %12 = vector.broadcast %cst_10 : f32 to vector<16x128xf32>
      %c0_11 = arith.constant 0 : index
      %c0_12 = arith.constant 0 : index
      %13 = vector.load %arg9[%c0_11, %c0_12] : memref<16x128xf32, #tpu.memory_space<vmem>>, vector<16x128xf32>
      tpu.vector_store %arg9[%c0_11, %c0_12], %12 {strides = array<i32>} : memref<16x128xf32, #tpu.memory_space<vmem>>, vector<16x128xf32>,
    } else {
    }
    %c0 = arith.constant 0 : index
    %c0_1 = arith.constant 0 : index
    %3 = vector.load %arg9[%c0, %c0_1] : memref<16x128xf32, #tpu.memory_space<vmem>>, vector<16x128xf32>
    %c0_2 = arith.constant 0 : index
    %c0_3 = arith.constant 0 : index
    %4 = vector.load %arg3[%c0_2, %c0_3] : memref<16x32xbf16, #tpu.memory_space<vmem>>, vector<16x32xbf16>
    %c0_4 = arith.constant 0 : index
    %c0_5 = arith.constant 0 : index
    %5 = vector.load %arg4[%c0_4, %c0_5] : memref<32x128xbf16, #tpu.memory_space<vmem>>, vector<32x128xbf16>
    %cst = arith.constant dense<0.000000e+00> : vector<16x128xf32>
    %6 = tpu.matmul %4, %5, %cst {dimension_numbers = #tpu.dot_dimension_numbers<[1], [0], [0], [1], [0, 0, 1, 1], [], []>} : vector<16x32xbf16>, vector<32x128xbf16>, vector<16x128xf32> -> vector<16x128xf32>
    %7 = arith.addf %3, %6 : vector<16x128xf32>
    %c0_6 = arith.constant 0 : index
    %c0_7 = arith.constant 0 : index
    %8 = vector.load %arg9[%c0_6, %c0_7] : memref<16x128xf32, #tpu.memory_space<vmem>>, vector<16x128xf32>
    tpu.vector_store %arg9[%c0_6, %c0_7], %7 {strides = array<i32>} : memref<16x128xf32, #tpu.memory_space<vmem>>, vector<16x128xf32>,
    %c0_i32_8 = arith.constant 0 : i32
    %9 = arith.cmpi eq, %arg2, %c0_i32_8 : i32
    %10 = arith.extui %9 : i1 to i32
    %c0_i32_9 = arith.constant 0 : i32
    %11 = arith.cmpi ne, %10, %c0_i32_9 : i32
    scf.if %11 {
      %c0_10 = arith.constant 0 : index
      %c0_11 = arith.constant 0 : index
      %12 = vector.load %arg9[%c0_10, %c0_11] : memref<16x128xf32, #tpu.memory_space<vmem>>, vector<16x128xf32>
      %c0_12 = arith.constant 0 : index
      %c0_13 = arith.constant 0 : index
      %13 = vector.load %arg5[%c0_12, %c0_13] : memref<1x128xf32, #tpu.memory_space<vmem>>, vector<1x128xf32>
      %14 = vector.broadcast %13 : vector<1x128xf32> to vector<16x128xf32>
      %15 = arith.addf %12, %14 : vector<16x128xf32>
      %c0_14 = arith.constant 0 : index
      %c0_15 = arith.constant 0 : index
      %16 = vector.load %arg6[%c0_14, %c0_15] : memref<16x128xbf16, #tpu.memory_space<vmem>>, vector<16x128xbf16>
      %c0_16 = arith.constant 0 : index
      %c0_17 = arith.constant 0 : index
      %17 = vector.load %arg7[%c0_16, %c0_17] : memref<128x128xbf16, #tpu.memory_space<vmem>>, vector<128x128xbf16>
      %cst_18 = arith.constant dense<0.000000e+00> : vector<16x128xf32>
      %18 = tpu.matmul %16, %17, %cst_18 {dimension_numbers = #tpu.dot_dimension_numbers<[1], [0], [0], [1], [0, 0, 1, 1], [], []>} : vector<16x128xbf16>, vector<128x128xbf16>, vector<16x128xf32> -> vector<16x128xf32>
      %19 = arith.addf %15, %18 : vector<16x128xf32>
      %c0_19 = arith.constant 0 : index
      %c0_20 = arith.constant 0 : index
      %20 = vector.load %arg8[%c0_19, %c0_20] : memref<16x128xf32, #tpu.memory_space<vmem>>, vector<16x128xf32>
      tpu.vector_store %arg8[%c0_19, %c0_20], %19 {strides = array<i32>} : memref<16x128xf32, #tpu.memory_space<vmem>>, vector<16x128xf32>,
    } else {
    }
    return
  }
  func.func @transform_0(%arg0: i32, %arg1: i32, %arg2: i32) -> (i32, i32) {
    %c0_i32 = arith.constant 0 : i32
    return %arg0, %arg2 : i32, i32
  }
  func.func @transform_1(%arg0: i32, %arg1: i32, %arg2: i32) -> (i32, i32) {
    %c0_i32 = arith.constant 0 : i32
    return %arg2, %arg1 : i32, i32
  }
  func.func @transform_2(%arg0: i32, %arg1: i32, %arg2: i32) -> (i32, i32) {
    %c0_i32 = arith.constant 0 : i32
    %c0_i32_0 = arith.constant 0 : i32
    return %c0_i32, %arg1 : i32, i32
  }
  func.func @transform_3(%arg0: i32, %arg1: i32, %arg2: i32) -> (i32, i32) {
    %c0_i32 = arith.constant 0 : i32
    %c0_i32_0 = arith.constant 0 : i32
    return %arg0, %c0_i32 : i32, i32
  }
  func.func @transform_4(%arg0: i32, %arg1: i32, %arg2: i32) -> (i32, i32) {
    %c0_i32 = arith.constant 0 : i32
    %c0_i32_0 = arith.constant 0 : i32
    return %c0_i32, %arg1 : i32, i32
  }
  func.func @transform_5(%arg0: i32, %arg1: i32, %arg2: i32) -> (i32, i32) {
    %c0_i32 = arith.constant 0 : i32
    return %arg0, %arg1 : i32, i32
  }
}

</mosaic_0001>

<llo_original>
// kernel: tpu_custom_call.1
$region0: #{tpu_custom_call.1}
  #allocation0 [shape = 'u32[]', space=smem, size = 0x4, offset = 0x4, fixed_abs, tag = 'smem constant byte address 0x4 - core index']
  #allocation1 [shape = 'u32[144,128]{1,0:T(1,128)}', space=vmem, size = 0x12000, scoped, tag = 'internal scratch']
  #allocation2 [shape = 'f32[16,128]{1,0:T(8,128)}', space=vmem, size = 0x2000, scoped, tag = 'scratch operand']
  %s0 = inlined_call_operand.hbm [shape: bf16[16,32], index: 0, kind: input, shape index: {}]
  %s1 = inlined_call_operand.hbm [shape: bf16[32,128], index: 1, kind: input, shape index: {}]
  %s2 = inlined_call_operand.vmem [shape: f32[1,128], index: 2, kind: input, shape index: {}]
  %s3 = inlined_call_operand.vmem [shape: bf16[16,128], index: 3, kind: input, shape index: {}]
  %s4 = inlined_call_operand.hbm [shape: bf16[128,128], index: 4, kind: input, shape index: {}]
  %s5 = inlined_call_operand.hbm [shape: f32[16,128], index: 5, kind: output, shape index: {}]
  %s6 = sld [smem:[#allocation0]]
  $region50: #{tpu_custom_call.1} parent=0
    _
  %s8 = ssub.s32 1, %s6
  %s9 = scalar_select 0, %s8, %s6
  $region1: #{tpu_custom_call.1} parent=0
    #allocation3 [shape = 'u8[4096]{0}', space=vmem, size = 0x1000, scoped, tag = 'input window, operand 0, single buffered']
    #allocation4 [shape = 's32[1]{0}', space=sflag, size = 0x4, scoped, tag = 'scoped memory for tpu_custom_call.1']
    #allocation5 [shape = 's32[1]{0}', space=sflag, size = 0x4, scoped, tag = 'scoped memory for tpu_custom_call.1']
    #allocation6 [shape = 'u8[8192]{0}', space=vmem, size = 0x2000, scoped, tag = 'input window, operand 1, single buffered']
    #allocation7 [shape = 's32[1]{0}', space=sflag, size = 0x4, scoped, tag = 'scoped memory for tpu_custom_call.1']
    #allocation8 [shape = 'u8[32768]{0}', space=vmem, size = 0x8000, scoped, tag = 'input window, operand 4, single buffered']
    #allocation9 [shape = 'u8[8192]{0}', space=vmem, size = 0x2000, scoped, tag = 'output window, operand 0, single buffered']
    %10 = vsyncpa [#allocation4], 0
    %11 = vsyncpa [#allocation7], 0
    %12 = vsyncpa [#allocation5], 0
    // Predicated region
    $region2: #{tpu_custom_call.1} parent=1 // pred_check
      _
    $region3: #{tpu_custom_call.1} parent=1 // pred_check_branch
      %14 = sbr.rel (0) target = $region5
    $region4: #{tpu_custom_call.1} parent=1 // pred_region
      %s16 = ssub.s32 128, 128
      %17 = vsyncadd [#allocation4], %s16
      %s18 = sshll.u32 [#allocation3], 4
      %s19 = int_to_ptr.vmem [resolvable:$true] %s18
      %24 = dma.hbm_to_vmem [thread:$0]  %s0, 128, %s19, [#allocation4], 64, 64, 4
    $region5: #{tpu_custom_call.1} parent=1 // pred_fallthru
      _
    // Predicated region
    $region6: #{tpu_custom_call.1} parent=1 // pred_check
      _
    $region7: #{tpu_custom_call.1} parent=1 // pred_check_branch
      %26 = sbr.rel (0) target = $region9
    $region8: #{tpu_custom_call.1} parent=1 // pred_region
      %s28 = ssub.s32 256, 256
      %29 = vsyncadd [#allocation7], %s28
      %s30 = sshll.u32 [#allocation6], 4
      %s31 = int_to_ptr.vmem [resolvable:$true] %s30
      %36 = dma.hbm_to_vmem [thread:$0]  %s1, 256, %s31, [#allocation7], 64, 64, 4
    $region9: #{tpu_custom_call.1} parent=1 // pred_fallthru
      _
    // Predicated region
    $region10: #{tpu_custom_call.1} parent=1 // pred_check
      _
    $region11: #{tpu_custom_call.1} parent=1 // pred_check_branch
      %38 = sbr.rel (0) target = $region13
    $region12: #{tpu_custom_call.1} parent=1 // pred_region
      _
    $region13: #{tpu_custom_call.1} parent=1 // pred_fallthru
      _
    // Predicated region
    $region14: #{tpu_custom_call.1} parent=1 // pred_check
      _
    $region15: #{tpu_custom_call.1} parent=1 // pred_check_branch
      %40 = sbr.rel (0) target = $region17
    $region16: #{tpu_custom_call.1} parent=1 // pred_region
      _
    $region17: #{tpu_custom_call.1} parent=1 // pred_fallthru
      _
    // Predicated region
    $region18: #{tpu_custom_call.1} parent=1 // pred_check
      _
    $region19: #{tpu_custom_call.1} parent=1 // pred_check_branch
      %42 = sbr.rel (0) target = $region21
    $region20: #{tpu_custom_call.1} parent=1 // pred_region
      %s44 = ssub.s32 1024, 1024
      %45 = vsyncadd [#allocation7], %s44
      %s46 = sshll.u32 [#allocation8], 4
      %s47 = int_to_ptr.vmem [resolvable:$true] %s46
      %52 = dma.hbm_to_vmem [thread:$0]  %s4, 1024, %s47, [#allocation7], 64, 64, 4
    $region21: #{tpu_custom_call.1} parent=1 // pred_fallthru
      _
    // Predicated region
    $region22: #{tpu_custom_call.1} parent=1 // pred_check
      _
    $region23: #{tpu_custom_call.1} parent=1 // pred_check_branch
      %54 = sbr.rel (0) target = $region25
    $region24: #{tpu_custom_call.1} parent=1 // pred_region
      %55 = dma.done [#allocation4], 128
    $region25: #{tpu_custom_call.1} parent=1 // pred_fallthru
      _
    // Predicated region
    $region26: #{tpu_custom_call.1} parent=1 // pred_check
      _
    $region27: #{tpu_custom_call.1} parent=1 // pred_check_branch
      %57 = sbr.rel (0) target = $region29
    $region28: #{tpu_custom_call.1} parent=1 // pred_region
      %58 = dma.done [#allocation7], 256
    $region29: #{tpu_custom_call.1} parent=1 // pred_fallthru
      _
    // Predicated region
    $region30: #{tpu_custom_call.1} parent=1 // pred_check
      _
    $region31: #{tpu_custom_call.1} parent=1 // pred_check_branch
      %60 = sbr.rel (0) target = $region33
    $region32: #{tpu_custom_call.1} parent=1 // pred_region
      %61 = dma.done [#allocation7], 1024
    $region33: #{tpu_custom_call.1} parent=1 // pred_fallthru
      _
    %p63 = scmp.eq.s32.totalorder 0, 0
    // Predicated region
    $region34: #{tpu_custom_call.1} parent=1 // pred_check
      %p64 = pneg %p63
    $region35: #{tpu_custom_call.1} parent=1 // pred_check_branch
      %66 = sbr.rel (%p64) target = $region37
    $region36: #{tpu_custom_call.1} parent=1 // pred_region
      %67 = vst [vmem:[#allocation2] sm:$0xff] 0.0
      %68 = vst [vmem:[#allocation2 + $0x8] sm:$0xff] 0.0
    $region37: #{tpu_custom_call.1} parent=1 // pred_fallthru
      _
    %v69 = vld [vmem:[#allocation2] sm:$0xff]
    %v70 = vld [vmem:[#allocation2 + $0x8] sm:$0xff]
    %v71 = vld [vmem:[#allocation3] sm:$0xf]
    %v72 = vld [vmem:[#allocation3 + $0x4] sm:$0xf]
    %v73 = vld [vmem:[#allocation6] sm:$0xf]
    %v74 = vld [vmem:[#allocation6 + $0x4] sm:$0xf]
    %v75 = vld [vmem:[#allocation6 + $0x8] sm:$0xf]
    %v76 = vld [vmem:[#allocation6 + $0xc] sm:$0xf]
    %v79 = vunpack.c.l.b16 %v71
    %v80 = vunpack.c.l.b16 %v72
    %v81 = vpack.c.b16 %v80, %v79
    %v86 = vunpack.c.l.b16 %v73
    %v87 = vunpack.c.l.b16 %v74
    %v88 = vunpack.c.l.b16 %v75
    %v89 = vunpack.c.l.b16 %v76
    %v90 = vpack.c.b16 %v87, %v86
    %v91 = vpack.c.b16 %v89, %v88
    %vm94 = vcmask 261120
    %v96 = vsel %vm94, %v81, 0
    %98 = vmatprep.subr.bf16.mxu0 0
    %99 = vmatpush1.bf16.msra.mxu0 %v90
    %100 = vmatprep.subr.bf16.mxu0 0
    %101 = vmatpush1.bf16.msra.mxu0 %v91
    %102 = vmatprep.subr.bf16.mxu0 0
    %103 = vmatpush1.bf16.msra.mxu0 0
    %104 = vmatprep.subr.bf16.mxu0 0
    %105 = vmatpush1.bf16.msra.mxu0 0
    %106 = vmatprep.subr.bf16.mxu0 0
    %107 = vmatpush1.bf16.msra.mxu0 0
    %108 = vmatprep.subr.bf16.mxu0 0
    %109 = vmatpush1.bf16.msra.mxu0 0
    %110 = vmatprep.subr.bf16.mxu0 0
    %111 = vmatpush1.bf16.msra.mxu0 0
    %112 = vmatprep.subr.bf16.mxu0 0
    %113 = vmatpush1.bf16.msra.mxu0 0
    %114 = vmatprep.subr.bf16.mxu0 0
    %115 = vmatpush1.bf16.msra.mxu0 0
    %116 = vmatprep.subr.bf16.mxu0 0
    %117 = vmatpush1.bf16.msra.mxu0 0
    %118 = vmatprep.subr.bf16.mxu0 0
    %119 = vmatpush1.bf16.msra.mxu0 0
    %120 = vmatprep.subr.bf16.mxu0 0
    %121 = vmatpush1.bf16.msra.mxu0 0
    %122 = vmatprep.subr.bf16.mxu0 0
    %123 = vmatpush1.bf16.msra.mxu0 0
    %124 = vmatprep.subr.bf16.mxu0 0
    %125 = vmatpush1.bf16.msra.mxu0 0
    %126 = vmatprep.subr.bf16.mxu0 0
    %127 = vmatpush1.bf16.msra.mxu0 0
    %128 = vmatprep.subr.bf16.mxu0 0
    %129 = vmatpush1.bf16.msra.mxu0 0
    %130 = vmatprep.mubr.bf16.mxu0 0
    %131 = vmatmul.mubr.bf16.gmra.mrb[0].mxu0 %v96
    %v132 = vpop.f32.mrb[0].mxu0
    %v133 = vadd.f32 0.0, %v132
    %v134 = vpop.f32.mrb[0].mxu0
    %v135 = vpop.f32.mrb[0].mxu0
    %v136 = vadd.f32 0.0, %v135
    %v137 = vpop.f32.mrb[0].mxu0
    %138 = vdwg.mxu0
    %v139 = vadd.f32 %v69, %v133
    %v140 = vadd.f32 %v70, %v136
    %141 = vst [vmem:[#allocation2] sm:$0xff] %v139
    %142 = vst [vmem:[#allocation2 + $0x8] sm:$0xff] %v140
    // Predicated region
    $region38: #{tpu_custom_call.1} parent=1 // pred_check
      %p143 = pneg %p63
    $region39: #{tpu_custom_call.1} parent=1 // pred_check_branch
      %145 = sbr.rel (%p143) target = $region41
    $region40: #{tpu_custom_call.1} parent=1 // pred_region
      %v146 = vld [vmem:[#allocation2] sm:$0xff]
      %v147 = vld [vmem:[#allocation2 + $0x8] sm:$0xff]
      %v148 = vld [vmem:[%s2] sm:$0x1]
      %v150 = vlaneseq
      %v151 = vshrl.u32 %v150, 7
      %v152 = vsub.s32 0, %v151
      %v153 = vrot.slane %v148, %v152
      %v155 = vadd.f32 %v146, %v153
      %v156 = vadd.f32 %v147, %v153
      %v157 = vld [vmem:[%s3] sm:$0xf]
      %v158 = vld [vmem:[%s3 + $0x4] sm:$0xf]
      %v159 = vld [vmem:[#allocation8] sm:$0xf]
      %v160 = vld [vmem:[#allocation8 + $0x4] sm:$0xf]
      %v161 = vld [vmem:[#allocation8 + $0x8] sm:$0xf]
      %v162 = vld [vmem:[#allocation8 + $0xc] sm:$0xf]
      %v163 = vld [vmem:[#allocation8 + $0x10] sm:$0xf]
      %v164 = vld [vmem:[#allocation8 + $0x14] sm:$0xf]
      %v165 = vld [vmem:[#allocation8 + $0x18] sm:$0xf]
      %v166 = vld [vmem:[#allocation8 + $0x1c] sm:$0xf]
      %v167 = vld [vmem:[#allocation8 + $0x20] sm:$0xf]
      %v168 = vld [vmem:[#allocation8 + $0x24] sm:$0xf]
      %v169 = vld [vmem:[#allocation8 + $0x28] sm:$0xf]
      %v170 = vld [vmem:[#allocation8 + $0x2c] sm:$0xf]
      %v171 = vld [vmem:[#allocation8 + $0x30] sm:$0xf]
      %v172 = vld [vmem:[#allocation8 + $0x34] sm:$0xf]
      %v173 = vld [vmem:[#allocation8 + $0x38] sm:$0xf]
      %v174 = vld [vmem:[#allocation8 + $0x3c] sm:$0xf]
      %v177 = vunpack.c.l.b16 %v157
      %v178 = vunpack.c.l.b16 %v158
      %v179 = vpack.c.b16 %v178, %v177
      %v197 = vunpack.c.l.b16 %v159
      %v198 = vunpack.c.l.b16 %v160
      %v199 = vunpack.c.l.b16 %v161
      %v200 = vunpack.c.l.b16 %v162
      %v201 = vunpack.c.l.b16 %v163
      %v202 = vunpack.c.l.b16 %v164
      %v203 = vunpack.c.l.b16 %v165
      %v204 = vunpack.c.l.b16 %v166
      %v205 = vunpack.c.l.b16 %v167
      %v206 = vunpack.c.l.b16 %v168
      %v207 = vunpack.c.l.b16 %v169
      %v208 = vunpack.c.l.b16 %v170
      %v209 = vunpack.c.l.b16 %v171
      %v210 = vunpack.c.l.b16 %v172
      %v211 = vunpack.c.l.b16 %v173
      %v212 = vunpack.c.l.b16 %v174
      %v213 = vpack.c.b16 %v198, %v197
      %v214 = vpack.c.b16 %v200, %v199
      %v215 = vpack.c.b16 %v202, %v201
      %v216 = vpack.c.b16 %v204, %v203
      %v217 = vpack.c.b16 %v206, %v205
      %v218 = vpack.c.b16 %v208, %v207
      %v219 = vpack.c.b16 %v210, %v209
      %v220 = vpack.c.b16 %v212, %v211
      %229 = vmatprep.subr.bf16.mxu0 0
      %230 = vmatpush1.bf16.msra.mxu0 %v213
      %231 = vmatprep.subr.bf16.mxu0 0
      %232 = vmatpush1.bf16.msra.mxu0 %v214
      %233 = vmatprep.subr.bf16.mxu0 0
      %234 = vmatpush1.bf16.msra.mxu0 %v215
      %235 = vmatprep.subr.bf16.mxu0 0
      %236 = vmatpush1.bf16.msra.mxu0 %v216
      %237 = vmatprep.subr.bf16.mxu0 0
      %238 = vmatpush1.bf16.msra.mxu0 %v217
      %239 = vmatprep.subr.bf16.mxu0 0
      %240 = vmatpush1.bf16.msra.mxu0 %v218
      %241 = vmatprep.subr.bf16.mxu0 0
      %242 = vmatpush1.bf16.msra.mxu0 %v219
      %243 = vmatprep.subr.bf16.mxu0 0
      %244 = vmatpush1.bf16.msra.mxu0 %v220
      %245 = vmatprep.subr.bf16.mxu0 0
      %246 = vmatpush1.bf16.msra.mxu0 0
      %247 = vmatprep.subr.bf16.mxu0 0
      %248 = vmatpush1.bf16.msra.mxu0 0
      %249 = vmatprep.subr.bf16.mxu0 0
      %250 = vmatpush1.bf16.msra.mxu0 0
      %251 = vmatprep.subr.bf16.mxu0 0
      %252 = vmatpush1.bf16.msra.mxu0 0
      %253 = vmatprep.subr.bf16.mxu0 0
      %254 = vmatpush1.bf16.msra.mxu0 0
      %255 = vmatprep.subr.bf16.mxu0 0
      %256 = vmatpush1.bf16.msra.mxu0 0
      %257 = vmatprep.subr.bf16.mxu0 0
      %258 = vmatpush1.bf16.msra.mxu0 0
      %259 = vmatprep.subr.bf16.mxu0 0
      %260 = vmatpush1.bf16.msra.mxu0 0
      %261 = vmatprep.mubr.bf16.mxu0 0
      %262 = vmatmul.mubr.bf16.gmra.mrb[0].mxu0 %v179
      %v263 = vpop.f32.mrb[0].mxu0
      %v264 = vadd.f32 0.0, %v263
      %v265 = vpop.f32.mrb[0].mxu0
      %v266 = vpop.f32.mrb[0].mxu0
      %v267 = vadd.f32 0.0, %v266
      %v268 = vpop.f32.mrb[0].mxu0
      %269 = vdwg.mxu0
      %v270 = vadd.f32 %v155, %v264
      %v271 = vadd.f32 %v156, %v267
      %272 = vst [vmem:[#allocation9] sm:$0xff] %v270
      %273 = vst [vmem:[#allocation9 + $0x8] sm:$0xff] %v271
    $region41: #{tpu_custom_call.1} parent=1 // pred_fallthru
      _
    // Predicated region
    $region42: #{tpu_custom_call.1} parent=1 // pred_check
      _
    $region43: #{tpu_custom_call.1} parent=1 // pred_check_branch
      %275 = sbr.rel (0) target = $region45
    $region44: #{tpu_custom_call.1} parent=1 // pred_region
      %s277 = ssub.s32 256, 256
      %278 = vsyncadd [#allocation5], %s277
      %s279 = sshll.u32 [#allocation9], 4
      %s280 = int_to_ptr.vmem [resolvable:$true] %s279
      %285 = dma.vmem_to_hbm [thread:$0]  %s280, 256, %s5, [#allocation5], 128, 128, 8
    $region45: #{tpu_custom_call.1} parent=1 // pred_fallthru
      _
    // Predicated region
    $region46: #{tpu_custom_call.1} parent=1 // pred_check
      _
    $region47: #{tpu_custom_call.1} parent=1 // pred_check_branch
      %287 = sbr.rel (0) target = $region49
    $region48: #{tpu_custom_call.1} parent=1 // pred_region
      %288 = dma.done [#allocation5], 256
    $region49: #{tpu_custom_call.1} parent=1 // pred_fallthru
      _
    %289 = vsyncpa [#allocation4], 1
    %290 = vsyncpa [#allocation7], 1
    %291 = vsyncpa [#allocation5], 1

</llo_original>
